<compile_context>
chip_gen: v7x
topology: tpu7x:2x2x1
jax: 0.10.0
libtpu: 0.0.40
codegen_flags: <defaults>
</compile_context>

<pallas_src>
import jax
import jax.numpy as jnp
from jax.experimental import pallas as pl
from jax.experimental.pallas import tpu as pltpu

LANES = 128        # vreg lane width
SUBLANES = 8       # vreg sublane depth (f32)
TARGET_STEPS = 8   # keep >= ~8 grid steps: pipeline overlap + 2 TCs on v7x


def linreg_kernel(x_ref, wb_ref, o_ref):
    # y = x @ W^T + b with in_features = out_features = 1 reduces to an
    # elementwise multiply-add on the VPU.  wb is a (2,) SMEM scalar pair.
    w = wb_ref[0]
    b = wb_ref[1]
    o_ref[...] = x_ref[...] * w + b


def _round_up(v, m):
    return ((v + m - 1) // m) * m


def linreg_forward(x, w, b, *, tm=8192):
    """x: (N, 1) f32, w: (1,) f32, b: (1,) f32 -> (N, 1) f32.

    tm: max slab rows per grid step (rows are 128 lanes wide, f32), so one
        tile is tm*512 bytes.  Default 8192 rows = 4 MiB/tile; with in+out
        double-buffering that is 16 MiB of pipeline buffers, inside the
        48 MiB scoped-VMEM budget requested below (v7x-safe: 64 MiB phys).
    """
    n, f = x.shape
    assert f == 1, "LinRegModel expects in_features == 1"
    assert x.dtype == jnp.float32, "reference model is f32"
    assert tm % SUBLANES == 0 and tm >= SUBLANES, "tm must be a multiple of 8"
    dtype = x.dtype

    # Pack weight + bias into one (2,) SMEM scalar array (single tiny fetch
    # instead of two per-step descriptors).
    wb = jnp.concatenate([w.reshape(-1), b.reshape(-1)]).astype(jnp.float32)

    # ---- lane-dense slab ----
    rows = pl.cdiv(n, LANES)
    aligned = (rows * LANES == n)
    if aligned:
        # Zero-copy bitcast reshape: no extra HBM pass over the input.
        x_slab = x.reshape(rows, LANES)
    else:
        # Tail is not 128-aligned: pad (<128 extra elements of real padding,
        # but jnp.pad does copy the array once).  Round rows to the sublane
        # depth so every block is cleanly (8k, 128).
        rows = _round_up(rows, SUBLANES)
        x_slab = jnp.pad(x.reshape(-1), (0, rows * LANES - n)).reshape(rows, LANES)

    # ---- tile-size selection: biggest tile that still leaves ~TARGET_STEPS
    # grid steps (pipeline overlap; work for both v7x TensorCores) ----
    if rows < SUBLANES:
        tm_eff = rows                      # block dim == full array dim (legal)
    else:
        tm_fit = _round_up(pl.cdiv(rows, TARGET_STEPS), SUBLANES)
        tm_eff = max(SUBLANES, min(tm, tm_fit))
    grid = (pl.cdiv(rows, tm_eff),)        # ragged last block is masked by Pallas

    cost = pl.CostEstimate(
        flops=2 * rows * LANES,                 # one mul + one add per element
        transcendentals=0,
        bytes_accessed=2 * rows * LANES * 4,    # f32 read + f32 write
    )

    y_slab = pl.pallas_call(
        linreg_kernel,
        out_shape=jax.ShapeDtypeStruct((rows, LANES), dtype),
        grid=grid,
        in_specs=[
            # x tile: (tm_eff, 128), auto double-buffered over the grid.
            pl.BlockSpec((tm_eff, LANES), lambda i: (i, 0)),
            # packed (w, b) scalars live in SMEM, whole array.
            pl.BlockSpec(memory_space=pltpu.MemorySpace.SMEM),
        ],
        out_specs=pl.BlockSpec((tm_eff, LANES), lambda i: (i, 0)),
        compiler_params=pltpu.CompilerParams(
            # NOTE: "parallel" is expected to let v7x shard the 1-D grid over
            # its 2 TCs; if xprof shows one TC idle, switch to CORE_PARALLEL.
            dimension_semantics=("parallel",),
            vmem_limit_bytes=48 * 1024 * 1024,  # explicit budget (v7x-safe)
        ),
        cost_estimate=cost,
    )(x_slab, wb)

    # ---- unpack ----
    if aligned:
        return y_slab.reshape(n, 1)             # zero-copy bitcast back
    return y_slab.reshape(-1)[:n].reshape(n, 1)  # only on the padded path


if __name__ == "__main__":
    key = jax.random.PRNGKey(0)
    kw, kb, k1, k2, k3 = jax.random.split(key, 5)

    # Deterministic parameter init matching PyTorch nn.Linear(1, 1) default:
    # uniform(-1/sqrt(fan_in), 1/sqrt(fan_in)) with fan_in = 1 -> U(-1, 1).
    w = jax.random.uniform(kw, (1,), dtype=jnp.float32, minval=-1.0, maxval=1.0)
    b = jax.random.uniform(kb, (1,), dtype=jnp.float32, minval=-1.0, maxval=1.0)

    def ref(x):
        return x @ w.reshape(1, 1).T + b

    # Case 1: salary-dataset-sized batch (30 rows) -> padded path, 1 grid step.
    x1 = jax.random.normal(k1, (30, 1), dtype=jnp.float32)
    y1 = jax.block_until_ready(linreg_forward(x1, w, b))
    assert y1.shape == (30, 1)
    assert jnp.allclose(y1, ref(x1), atol=1e-6, rtol=1e-6)

    # Case 2: 128-aligned batch -> fully zero-copy path, 5 grid steps with a
    # ragged (masked) last row-block (rows=35, tile=8).
    x2 = jax.random.normal(k2, (4480, 1), dtype=jnp.float32)
    y2 = jax.block_until_ready(linreg_forward(x2, w, b))
    assert y2.shape == (4480, 1)
    assert jnp.allclose(y2, ref(x2), atol=1e-6, rtol=1e-6)

    # Case 3: unaligned batch -> padded path with a multi-step grid.
    x3 = jax.random.normal(k3, (4099, 1), dtype=jnp.float32)
    y3 = jax.block_until_ready(linreg_forward(x3, w, b))
    assert y3.shape == (4099, 1)
    assert jnp.allclose(y3, ref(x3), atol=1e-6, rtol=1e-6)

    print("KERNEL_OK")
</pallas_src>

<mosaic_0001>
module attributes {stable_mosaic.version = 11 : i64} {
  func.func @linreg_kernel(%arg0: i32, %arg1: memref<8x128xf32, #tpu.memory_space<vmem>>, %arg2: memref<2xf32, #tpu.memory_space<smem>>, %arg3: memref<8x128xf32, #tpu.memory_space<vmem>>) attributes {dimension_semantics = [#tpu.dimension_semantics<parallel>], iteration_bounds = array<i64: 1>, scalar_prefetch = 0 : i64, scratch_operands = 0 : i64, tpu.core_type = #tpu.core_type<tc>, window_params = [{transform_indices = @transform_0, window_bounds = array<i64: 8, 128>}, {transform_indices = @transform_1, window_bounds = array<i64: 2>}, {transform_indices = @transform_2, window_bounds = array<i64: 8, 128>}]} {
    %c0 = arith.constant 0 : index
    %0 = memref.load %arg2[%c0] : memref<2xf32, #tpu.memory_space<smem>>
    %c1 = arith.constant 1 : index
    %1 = memref.load %arg2[%c1] : memref<2xf32, #tpu.memory_space<smem>>
    %c0_0 = arith.constant 0 : index
    %c0_1 = arith.constant 0 : index
    %2 = vector.load %arg1[%c0_0, %c0_1] : memref<8x128xf32, #tpu.memory_space<vmem>>, vector<8x128xf32>
    %3 = vector.broadcast %0 : f32 to vector<8x128xf32>
    %4 = arith.mulf %2, %3 : vector<8x128xf32>
    %5 = vector.broadcast %1 : f32 to vector<8x128xf32>
    %6 = arith.addf %4, %5 : vector<8x128xf32>
    %c0_2 = arith.constant 0 : index
    %c0_3 = arith.constant 0 : index
    %7 = vector.load %arg3[%c0_2, %c0_3] : memref<8x128xf32, #tpu.memory_space<vmem>>, vector<8x128xf32>
    tpu.vector_store %arg3[%c0_2, %c0_3], %6 {strides = array<i32>} : memref<8x128xf32, #tpu.memory_space<vmem>>, vector<8x128xf32>,
    return
  }
  func.func @transform_0(%arg0: i32) -> (i32, i32) {
    %c0_i32 = arith.constant 0 : i32
    %c0_i32_0 = arith.constant 0 : i32
    return %arg0, %c0_i32 : i32, i32
  }
  func.func @transform_1(%arg0: i32) -> i32 {
    %c0_i32 = arith.constant 0 : i32
    %c0_i32_0 = arith.constant 0 : i32
    return %c0_i32 : i32
  }
  func.func @transform_2(%arg0: i32) -> (i32, i32) {
    %c0_i32 = arith.constant 0 : i32
    %c0_i32_0 = arith.constant 0 : i32
    return %arg0, %c0_i32 : i32, i32
  }
}

</mosaic_0001>

<llo_original>
// kernel: tpu_custom_call.1
$region0: #{tpu_custom_call.1}
  #allocation0 [shape = 'u32[]', space=smem, size = 0x4, offset = 0x4, fixed_abs, tag = 'smem constant byte address 0x4 - core index']
  #allocation1 [shape = 'u32[144,128]{1,0:T(1,128)}', space=vmem, size = 0x12000, scoped, tag = 'internal scratch']
  %s0 = inlined_call_operand.hbm [shape: f32[8,128], index: 0, kind: input, shape index: {}]
  %s1 = inlined_call_operand.vmem [shape: f32[2], index: 1, kind: input, shape index: {}]
  %s2 = inlined_call_operand.hbm [shape: f32[8,128], index: 2, kind: output, shape index: {}]
  %s3 = sld [smem:[#allocation0]]
  $region26: #{tpu_custom_call.1} parent=0
    _
  %s5 = ssub.s32 1, %s3
  %s6 = scalar_select 0, %s5, %s3
  $region1: #{tpu_custom_call.1} parent=0
    #allocation2 [shape = 'u8[4096]{0}', space=vmem, size = 0x1000, scoped, tag = 'input window, operand 0, single buffered']
    #allocation3 [shape = 's32[1]{0}', space=sflag, size = 0x4, scoped, tag = 'scoped memory for tpu_custom_call.1']
    #allocation4 [shape = 's32[1]{0}', space=sflag, size = 0x4, scoped, tag = 'scoped memory for tpu_custom_call.1']
    #allocation5 [shape = 's32[1]{0}', space=sflag, size = 0x4, scoped, tag = 'scoped memory for tpu_custom_call.1']
    #allocation6 [shape = 'u8[512]{0}', space=smem, size = 0x200, scoped, tag = 'input window, operand 1, single buffered']
    #allocation7 [shape = 'u8[4096]{0}', space=vmem, size = 0x1000, scoped, tag = 'output window, operand 0, single buffered']
    %7 = vsyncpa [#allocation3], 0
    %8 = vsyncpa [#allocation5], 0
    %9 = vsyncpa [#allocation4], 0
    // Predicated region
    $region2: #{tpu_custom_call.1} parent=1 // pred_check
      _
    $region3: #{tpu_custom_call.1} parent=1 // pred_check_branch
      %11 = sbr.rel (0) target = $region5
    $region4: #{tpu_custom_call.1} parent=1 // pred_region
      %s13 = ssub.s32 128, 128
      %14 = vsyncadd [#allocation3], %s13
      %s16 = sshll.u32 [#allocation2], 4
      %s17 = int_to_ptr.vmem [resolvable:$true] %s16
      %19 = dma.hbm_to_vmem [thread:$0]  %s0, 128, %s17, [#allocation3]
    $region5: #{tpu_custom_call.1} parent=1 // pred_fallthru
      _
    // Predicated region
    $region6: #{tpu_custom_call.1} parent=1 // pred_check
      _
    $region7: #{tpu_custom_call.1} parent=1 // pred_check_branch
      %21 = sbr.rel (0) target = $region9
    $region8: #{tpu_custom_call.1} parent=1 // pred_region
      %s23 = ssub.s32 16, 16
      %24 = vsyncadd [#allocation5], %s23
      %s26 = sshll.u32 %s1, 4
      %s27 = int_to_ptr.vmem [resolvable:$true] %s26
      %29 = dma.vmem_to_smem %s27, 16, [#allocation6], [#allocation5]
    $region9: #{tpu_custom_call.1} parent=1 // pred_fallthru
      _
    // Predicated region
    $region10: #{tpu_custom_call.1} parent=1 // pred_check
      _
    $region11: #{tpu_custom_call.1} parent=1 // pred_check_branch
      %31 = sbr.rel (0) target = $region13
    $region12: #{tpu_custom_call.1} parent=1 // pred_region
      %32 = dma.done [#allocation3], 128
    $region13: #{tpu_custom_call.1} parent=1 // pred_fallthru
      _
    // Predicated region
    $region14: #{tpu_custom_call.1} parent=1 // pred_check
      _
    $region15: #{tpu_custom_call.1} parent=1 // pred_check_branch
      %34 = sbr.rel (0) target = $region17
    $region16: #{tpu_custom_call.1} parent=1 // pred_region
      %35 = dma.done [#allocation5], 16
    $region17: #{tpu_custom_call.1} parent=1 // pred_fallthru
      _
    %36 = sfence
    %s37 = sld [smem:[#allocation6]]
    %s38 = sld [smem:[#allocation6 + $0x1]]
    %v39 = vld [vmem:[#allocation2] sm:$0xff]
    %v40 = vstv %s37
    %v41 = vmul.f32 %v39, %v40
    %v42 = vstv %s38
    %v43 = vadd.f32 %v41, %v42
    %44 = vst [vmem:[#allocation7] sm:$0xff] %v43
    // Predicated region
    $region18: #{tpu_custom_call.1} parent=1 // pred_check
      _
    $region19: #{tpu_custom_call.1} parent=1 // pred_check_branch
      %46 = sbr.rel (0) target = $region21
    $region20: #{tpu_custom_call.1} parent=1 // pred_region
      %s48 = ssub.s32 128, 128
      %49 = vsyncadd [#allocation4], %s48
      %s51 = sshll.u32 [#allocation7], 4
      %s52 = int_to_ptr.vmem [resolvable:$true] %s51
      %54 = dma.vmem_to_hbm [thread:$0]  %s52, 128, %s2, [#allocation4]
    $region21: #{tpu_custom_call.1} parent=1 // pred_fallthru
      _
    // Predicated region
    $region22: #{tpu_custom_call.1} parent=1 // pred_check
      _
    $region23: #{tpu_custom_call.1} parent=1 // pred_check_branch
      %56 = sbr.rel (0) target = $region25
    $region24: #{tpu_custom_call.1} parent=1 // pred_region
      %57 = dma.done [#allocation4], 128
    $region25: #{tpu_custom_call.1} parent=1 // pred_fallthru
      _
    %58 = vsyncpa [#allocation3], 1
    %59 = vsyncpa [#allocation4], 1
    %60 = vsyncpa [#allocation5], 1

</llo_original>
